<compile_context>
chip_gen: v7x
topology: tpu7x:2x2x1
jax: 0.10.0
libtpu: 0.0.40
codegen_flags: <defaults>
</compile_context>

<pallas_src>
import jax
import jax.numpy as jnp
from jax import lax
from jax.experimental import pallas as pl
from jax.experimental.pallas import tpu as pltpu

BN_EPS = 1e-5
_VMEM_LIMIT = 48 * 1024 * 1024  # <= v7x physical (64 MiB); > v5e/v6e defaults


# ---------------------------------------------------------------------------
# Kernel 1: spatial-attention weight map, one K-tile of the flat (K, C) layout
# that the final (HW, C)-view multiply needs (K = HW // C).
#   x_red block is x.view(B, C, K, C)[b, :, k_tile slice, :].
#   max/mean over the channel axis -> folded 1x1 conv + BN -> ReLU -> sigmoid.
# Output is tiny (B, K, C) — no x-sized intermediate goes back to HBM.
# ---------------------------------------------------------------------------
def _prep_kernel(x_red_ref, sa_ref, wmap_ref):
    x = x_red_ref[0].astype(jnp.float32)               # (C, k_tile, C)
    a, b, c, inv_c = sa_ref[0], sa_ref[1], sa_ref[2], sa_ref[3]
    mx = jnp.max(x, axis=0)                             # (k_tile, C)
    avg = jnp.sum(x, axis=0) * inv_c                    # (k_tile, C)
    fmap = a * mx + b * avg + c                         # conv(2->1,1x1) + folded BN
    wmap_ref[0] = jax.nn.sigmoid(jnp.maximum(fmap, 0.0)).astype(wmap_ref.dtype)


# ---------------------------------------------------------------------------
# Kernel 2: fused  Bw = sigmoid(x @ W_bi^T + b),  BwY = Bw @ Y,
#                  out = BwY + x * weight_map      (per (batch, HW-tile))
# Weights arrive pre-transposed ((C,S)) so both dots contract on the RHS
# sublane axis; the weight-map tile is pre-repeated to (hw_tile, C).
# ---------------------------------------------------------------------------
def _fuse_kernel(x_ref, wbi_ref, bbi_ref, y_ref, w_ref, out_ref):
    xf = x_ref[0]                                       # (hw_tile, C), stream dtype
    logits = jnp.dot(xf, wbi_ref[...],
                     preferred_element_type=jnp.float32) + bbi_ref[...]
    bw = jax.nn.sigmoid(logits)                         # (hw_tile, S), f32
    yb = y_ref[0]                                       # (S, C), stream dtype
    bwy = jnp.dot(bw.astype(yb.dtype), yb,
                  preferred_element_type=jnp.float32)   # (hw_tile, C), f32
    out_ref[0] = (bwy + xf.astype(jnp.float32) * w_ref[0].astype(jnp.float32)
                  ).astype(out_ref.dtype)


def _pick_hw_tile(HW, K, target):
    """Largest HW tile <= target that divides HW, is a whole number of
    weight-map periods K, and keeps the sublane block dim 8-aligned."""
    if HW <= target:
        return HW
    m_total = HW // K
    cands = [K * m for m in range(1, m_total + 1)
             if m_total % m == 0 and K * m <= target and (K * m) % 8 == 0]
    return max(cands) if cands else HW


def _pick_k_tile(K, target):
    """Largest K tile <= target dividing K and 8-aligned (bounds prep VMEM)."""
    if K <= target:
        return K
    cands = [k for k in range(8, target + 1) if K % k == 0 and k % 8 == 0]
    return max(cands) if cands else K


# ---------------------------------------------------------------------------
# Wrapper
# ---------------------------------------------------------------------------
def token_fuser(y, x, params, *, hw_tile_target=1024, k_tile_target=512):
    B, S, C = y.shape
    Bx, H, W, Cx = x.shape
    assert (Bx, Cx) == (B, C)
    HW = H * W
    if HW % C != 0:
        raise NotImplementedError("token_fuser requires H*W % C == 0")

    stream_dtype = x.dtype                               # bf16 in production
    f32 = jnp.float32

    w_proj = params["w_proj"].astype(f32)                # (S, S) Linear(S,S).weight
    w_bi = params["w_bi"]                                # (S, C) Linear(C,S).weight
    b_bi = params["b_bi"].astype(f32)                    # (S,)
    sa = params["sa"].astype(f32)                        # (8,) conv/BN scalars

    # One-time wrapper transposes: in-kernel dots contract on RHS sublane axis.
    w_proj_t = w_proj.T                                  # (S, S)
    w_bi_t = w_bi.T.astype(stream_dtype)                 # (C, S)

    # Fold eval-mode BatchNorm into the 1x1-conv scalars (host side, O(1)).
    scale = sa[3] * lax.rsqrt(sa[6] + BN_EPS)            # gamma / sqrt(var + eps)
    sa_folded = jnp.stack([
        sa[0] * scale,                                    # max-branch weight
        sa[1] * scale,                                    # avg-branch weight
        (sa[2] - sa[5]) * scale + sa[4],                  # folded bias
        jnp.asarray(1.0 / C, f32),                        # 1/C for the mean
    ]).astype(f32)

    # ---- Stage 1 (plain XLA): token projection. (B*C,S)@(S,S) is far below
    # pallas dispatch cost; f32 accumulate, store in stream dtype. -------------
    y_sc = jnp.dot(y.reshape(B * C, S).astype(f32), w_proj_t,
                   preferred_element_type=f32).reshape(B, S, C).astype(stream_dtype)

    # ---- Stage 2: spatial-attention weight map (tiny output, one x read) ----
    K = HW // C                                          # period length in rows
    k_tile = _pick_k_tile(K, k_tile_target)
    n_k = K // k_tile
    x_red = x.reshape(B, C, K, C)                        # flat view of x.view(B,C,H,W)
    wmap = pl.pallas_call(
        _prep_kernel,
        out_shape=jax.ShapeDtypeStruct((B, K, C), stream_dtype),
        grid=(B, n_k),
        in_specs=[pl.BlockSpec((1, C, k_tile, C), lambda b, kq: (b, 0, kq, 0)),
                  pl.BlockSpec(memory_space=pltpu.MemorySpace.SMEM)],
        out_specs=pl.BlockSpec((1, k_tile, C), lambda b, kq: (b, kq, 0)),
        compiler_params=pltpu.CompilerParams(
            dimension_semantics=("parallel", "parallel"),
            vmem_limit_bytes=_VMEM_LIMIT),
    )(x_red, sa_folded)

    # ---- Stage 3: fused Bi / sigmoid / Bw@Y / weighted residual add ----------
    hw_tile = _pick_hw_tile(HW, K, hw_tile_target)
    n_hw = HW // hw_tile
    n_rep = hw_tile // K
    # Repeat the tiny per-batch period to exactly one hw-tile ONCE (wrapper,
    # O(hw_tile*C) per batch) instead of a per-grid-step in-kernel concat.
    wrows = wmap if n_rep == 1 else jnp.tile(wmap, (1, n_rep, 1))   # (B,hw_tile,C)
    x_hwc = x.reshape(B, HW, C)                          # natural reshape (free)

    # NOTE: C < 128 (demo shapes) makes the out block lane-sparse (masked vst);
    # production C % 128 == 0 shapes are already lane-dense.
    out = pl.pallas_call(
        _fuse_kernel,
        out_shape=jax.ShapeDtypeStruct((B, HW, C), stream_dtype),
        grid=(B, n_hw),
        in_specs=[
            pl.BlockSpec((1, hw_tile, C), lambda b, t: (b, t, 0)),  # x (streamed)
            pl.BlockSpec((C, S), lambda b, t: (0, 0)),              # W_bi^T (resident)
            pl.BlockSpec((1, S), lambda b, t: (0, 0)),              # b_bi (resident)
            pl.BlockSpec((1, S, C), lambda b, t: (b, 0, 0)),        # Y per batch
            pl.BlockSpec((1, hw_tile, C), lambda b, t: (b, 0, 0)),  # weight tile per batch
        ],
        out_specs=pl.BlockSpec((1, hw_tile, C), lambda b, t: (b, t, 0)),
        compiler_params=pltpu.CompilerParams(
            dimension_semantics=("parallel", "parallel"),
            vmem_limit_bytes=_VMEM_LIMIT),
    )(x_hwc, w_bi_t, b_bi.reshape(1, S), y_sc, wrows)

    return out.reshape(B, H, W, C)


# ---------------------------------------------------------------------------
# Pure-JAX reference mirroring the PyTorch forward exactly (for sanity check)
# ---------------------------------------------------------------------------
def token_fuser_ref(y, x, params):
    B, S, C = y.shape
    _, H, W, _ = x.shape
    HW = H * W
    sa = params["sa"]

    Y = (y.reshape(B, C, S) @ params["w_proj"].T).reshape(B, S, C)
    Bw = jax.nn.sigmoid(x @ params["w_bi"].T + params["b_bi"]).reshape(B, HW, S)
    BwY = Bw @ Y

    xv = x.reshape(B, C, H, W)
    mx = jnp.max(xv, axis=1, keepdims=True)
    avg = jnp.mean(xv, axis=1, keepdims=True)
    fmap = sa[0] * mx + sa[1] * avg + sa[2]
    fmap = (fmap - sa[5]) / jnp.sqrt(sa[6] + BN_EPS) * sa[3] + sa[4]
    wmap = jax.nn.sigmoid(jnp.maximum(fmap, 0.0))
    xj = (xv * wmap).reshape(B, HW, C)

    return (BwY + xj).reshape(B, H, W, C)


def _make_inputs(key, B, H, W, C, S, dtype):
    k_proj, k_bi, k_bib, k_conv, k_y, k_x = jax.random.split(key, 6)
    w_proj = jax.random.normal(k_proj, (S, S), jnp.float32) * 0.2
    w_bi = jax.random.normal(k_bi, (S, C), jnp.float32) * 0.2
    b_bi = jax.random.normal(k_bib, (S,), jnp.float32) * 0.1
    conv_w = jax.random.normal(k_conv, (2,), jnp.float32) * 0.5   # Conv2d(2,1,1x1).weight
    # [w_mx, w_avg, conv_b, gamma, beta, running_mean, running_var, pad]
    sa = jnp.array([conv_w[0], conv_w[1], 0.05, 1.0, 0.0, 0.0, 1.0, 0.0], jnp.float32)
    params = {"w_proj": w_proj, "w_bi": w_bi, "b_bi": b_bi, "sa": sa}
    y = jax.random.normal(k_y, (B, S, C), jnp.float32).astype(dtype)
    x = jax.random.normal(k_x, (B, H, W, C), jnp.float32).astype(dtype)
    return params, y, x


if __name__ == "__main__":
    key = jax.random.PRNGKey(0)

    # 1) f32, single HW tile (exact-path check against the PyTorch semantics).
    params, y, x = _make_inputs(key, 2, 8, 8, 4, 8, jnp.float32)
    out = jax.block_until_ready(token_fuser(y, x, params))
    ref = token_fuser_ref(y, x, params)
    assert out.shape == (2, 8, 8, 4)
    if not jnp.allclose(out, ref, atol=1e-4, rtol=1e-4):
        raise AssertionError("f32 single-tile mismatch vs reference")

    # 2) bf16 streaming path (halved HBM traffic), loose tolerance.
    params, y, x = _make_inputs(key, 2, 8, 8, 4, 8, jnp.bfloat16)
    out = jax.block_until_ready(token_fuser(y, x, params))
    ref = token_fuser_ref(y.astype(jnp.float32), x.astype(jnp.float32), params)
    if not jnp.allclose(out.astype(jnp.float32), ref, atol=1e-1, rtol=1e-1):
        raise AssertionError("bf16 streaming mismatch vs reference")

    # 3) multi-tile path: n_hw > 1, n_rep > 1 and a K-tiled prep kernel.
    params, y, x = _make_inputs(jax.random.PRNGKey(1), 2, 16, 16, 4, 8, jnp.float32)
    out = jax.block_until_ready(
        token_fuser(y, x, params, hw_tile_target=128, k_tile_target=32))
    ref = token_fuser_ref(y, x, params)
    assert out.shape == (2, 16, 16, 4)
    if not jnp.allclose(out, ref, atol=1e-4, rtol=1e-4):
        raise AssertionError("f32 multi-tile mismatch vs reference")

    print("KERNEL_OK")
</pallas_src>

<mosaic_0001>
module attributes {stable_mosaic.version = 11 : i64} {
  func.func @_prep_kernel(%arg0: i32, %arg1: i32, %arg2: memref<1x4x16x4xf32, #tpu.memory_space<vmem>>, %arg3: memref<4xf32, #tpu.memory_space<smem>>, %arg4: memref<1x16x4xf32, #tpu.memory_space<vmem>>) attributes {dimension_semantics = [#tpu.dimension_semantics<parallel>, #tpu.dimension_semantics<parallel>], iteration_bounds = array<i64: 2, 1>, scalar_prefetch = 0 : i64, scratch_operands = 0 : i64, tpu.core_type = #tpu.core_type<tc>, window_params = [{transform_indices = @transform_0, window_bounds = array<i64: 1, 4, 16, 4>}, {transform_indices = @transform_1, window_bounds = array<i64: 4>}, {transform_indices = @transform_2, window_bounds = array<i64: 1, 16, 4>}]} {
    %c0 = arith.constant 0 : index
    %c0_0 = arith.constant 0 : index
    %c0_1 = arith.constant 0 : index
    %c0_2 = arith.constant 0 : index
    %0 = vector.load %arg2[%c0, %c0_0, %c0_1, %c0_2] : memref<1x4x16x4xf32, #tpu.memory_space<vmem>>, vector<1x4x16x4xf32>
    %1 = vector.shape_cast %0 : vector<1x4x16x4xf32> to vector<4x16x4xf32>
    %c0_3 = arith.constant 0 : index
    %2 = memref.load %arg3[%c0_3] : memref<4xf32, #tpu.memory_space<smem>>
    %c1 = arith.constant 1 : index
    %3 = memref.load %arg3[%c1] : memref<4xf32, #tpu.memory_space<smem>>
    %c2 = arith.constant 2 : index
    %4 = memref.load %arg3[%c2] : memref<4xf32, #tpu.memory_space<smem>>
    %c3 = arith.constant 3 : index
    %5 = memref.load %arg3[%c3] : memref<4xf32, #tpu.memory_space<smem>>
    %cst = arith.constant dense<0xFF800000> : vector<16x4xf32>
    %6 = vector.multi_reduction <maximumf>, %1, %cst [0] : vector<4x16x4xf32> to vector<16x4xf32>
    %cst_4 = arith.constant dense<0.000000e+00> : vector<16x4xf32>
    %7 = vector.multi_reduction <add>, %1, %cst_4 [0] : vector<4x16x4xf32> to vector<16x4xf32>
    %8 = vector.broadcast %5 : f32 to vector<16x4xf32>
    %9 = arith.mulf %7, %8 : vector<16x4xf32>
    %10 = vector.broadcast %2 : f32 to vector<16x4xf32>
    %11 = arith.mulf %10, %6 : vector<16x4xf32>
    %12 = vector.broadcast %3 : f32 to vector<16x4xf32>
    %13 = arith.mulf %12, %9 : vector<16x4xf32>
    %14 = arith.addf %11, %13 : vector<16x4xf32>
    %15 = vector.broadcast %4 : f32 to vector<16x4xf32>
    %16 = arith.addf %14, %15 : vector<16x4xf32>
    %cst_5 = arith.constant 0.000000e+00 : f32
    %17 = vector.broadcast %cst_5 : f32 to vector<16x4xf32>
    %18 = arith.maximumf %16, %17 : vector<16x4xf32>
    %19 = arith.negf %18 : vector<16x4xf32>
    %20 = math.exp %19 : vector<16x4xf32>
    %cst_6 = arith.constant 1.000000e+00 : f32
    %21 = vector.broadcast %cst_6 : f32 to vector<16x4xf32>
    %22 = arith.addf %21, %20 : vector<16x4xf32>
    %23 = arith.divf %21, %22 : vector<16x4xf32>
    %c0_7 = arith.constant 0 : index
    %c0_8 = arith.constant 0 : index
    %c0_9 = arith.constant 0 : index
    %24 = vector.load %arg4[%c0_7, %c0_8, %c0_9] : memref<1x16x4xf32, #tpu.memory_space<vmem>>, vector<1x16x4xf32>
    %25 = vector.shape_cast %24 : vector<1x16x4xf32> to vector<16x4xf32>
    %26 = vector.shape_cast %23 : vector<16x4xf32> to vector<1x16x4xf32>
    tpu.vector_store %arg4[%c0_7, %c0_8, %c0_9], %26 {strides = array<i32>} : memref<1x16x4xf32, #tpu.memory_space<vmem>>, vector<1x16x4xf32>,
    return
  }
  func.func @transform_0(%arg0: i32, %arg1: i32) -> (i32, i32, i32, i32) {
    %c0_i32 = arith.constant 0 : i32
    %c0_i32_0 = arith.constant 0 : i32
    %c0_i32_1 = arith.constant 0 : i32
    return %arg0, %c0_i32, %arg1, %c0_i32_0 : i32, i32, i32, i32
  }
  func.func @transform_1(%arg0: i32, %arg1: i32) -> i32 {
    %c0_i32 = arith.constant 0 : i32
    %c0_i32_0 = arith.constant 0 : i32
    return %c0_i32 : i32
  }
  func.func @transform_2(%arg0: i32, %arg1: i32) -> (i32, i32, i32) {
    %c0_i32 = arith.constant 0 : i32
    %c0_i32_0 = arith.constant 0 : i32
    return %arg0, %arg1, %c0_i32 : i32, i32, i32
  }
}

</mosaic_0001>

<llo_original>
// kernel: tpu_custom_call.1
$region0: #{tpu_custom_call.1}
  #allocation0 [shape = 'u32[]', space=smem, size = 0x4, offset = 0x4, fixed_abs, tag = 'smem constant byte address 0x4 - core index']
  #allocation1 [shape = 'u32[144,128]{1,0:T(1,128)}', space=vmem, size = 0x12000, scoped, tag = 'internal scratch']
  %s0 = inlined_call_operand.vmem [shape: f32[2,4,16,4], index: 0, kind: input, shape index: {}]
  %s1 = inlined_call_operand.vmem [shape: f32[4], index: 1, kind: input, shape index: {}]
  %s2 = inlined_call_operand.vmem [shape: f32[2,16,4], index: 2, kind: output, shape index: {}]
  %s3 = sld [smem:[#allocation0]]
  $region45: #{tpu_custom_call.1} parent=0
    _
  %s5 = ssub.s32 1, %s3
  %s6 = scalar_select 0, %s5, %s3
  $region1: #{tpu_custom_call.1} parent=0
    #allocation2 [shape = 'u8[512]{0}', space=smem, size = 0x200, scoped, tag = 'input window, operand 1, single buffered']
    #allocation3 [shape = 's32[2]{0}', space=sflag, size = 0x8, scoped, tag = 'scoped memory for tpu_custom_call.1']
    %7 = vsyncpa [#allocation3], 0
    loop: start=0, step=1, limit=4
    $region2: #{tpu_custom_call.1} parent=1 // loop_pre_header
      _
    $region3: #{tpu_custom_call.1} parent=1 // loop_header
      %s9 = sphi 0, %s13
      %p10 = scmp.ge.s32.totalorder %s9, 4
      %s16 = sphi 0, %s28
      %s17 = sphi 0, %s24
      %s18 = sphi 0, %s16
      %s19 = sphi 0, %s17
      %s20 = sphi 0, %s18
      %s21 = sphi 0, %s19
      %s33 = sphi 0, %s35
      %s36 = sphi 0, %s33
      %s37 = sphi 0, %s36
      %s53 = sphi 0, %s37
      %s57 = sphi 0, %s57
      %s59 = sphi 0, %s57
      %s60 = sphi 0, %s59
      %s74 = sphi 0, %s60
      %s82 = sphi 0, %s84
      %s85 = sphi 0, %s82
      %s86 = sphi 0, %s85
      %s102 = sphi 0, %s86
    $region4: #{tpu_custom_call.1} parent=1 // loop_header_branch
      %12 = sbr.rel (%p10) target = $region8
    $region5: #{tpu_custom_call.1} parent=1 // loop_body
      %s14 = ssub.s32 %s9, 1
      %s15 = ssub.s32 %s9, 2
      %s22 = sadd.s32 1, %s17
      %p23 = scmp.ge.s32.totalorder %s22, 1
      %s24 = scalar_select %p23, 0, %s22
      %s25 = sadd.s32 1, %s16
      %s26 = scalar_select %p23, %s25, %s16
      %p27 = scmp.ge.s32.totalorder %s26, 2
      %s28 = scalar_select %p27, 0, %s26
      %s29 = ssub.s32 %s16, %s28
      %s30 = ssub.s32 %s17, %s24
      %s31 = sor.u32 %s29, %s30
      %p32 = scmp.eq.s32.totalorder %s31, 0
      %s34 = sadd.s32 %s33, 1
      %s35 = scalar_select %p32, %s33, %s34
      %p38 = pneg %p32
      %p39 = scmp.eq.s32.totalorder %s9, 1
      %p40 = por %p38, %p39
      %p41 = scmp.ne.s32.totalorder %s33, %s36
      %p42 = scmp.eq.s32.totalorder %s9, 0
      %p43 = por %p41, %p42
      %p44 = scmp.ne.s32.totalorder %s33, %s36
      %p45 = scmp.eq.s32.totalorder %s14, 1
      %p46 = por %p44, %p45
      %p47 = scmp.ne.s32.totalorder %s36, %s37
      %p48 = scmp.eq.s32.totalorder %s14, 0
      %p49 = por %p47, %p48
      %p50 = scmp.ne.s32.totalorder %s36, %s37
      %p51 = scmp.eq.s32.totalorder %s15, 1
      %p52 = por %p50, %p51
      %p54 = scmp.ne.s32.totalorder %s37, %s53
      %p55 = scmp.eq.s32.totalorder %s15, 0
      %p56 = por %p54, %p55
      %s58 = sadd.s32 %s57, 1
      %p61 = scmp.eq.s32.totalorder %s9, 1
      %p62 = scmp.ne.s32.totalorder %s57, %s59
      %p63 = scmp.eq.s32.totalorder %s9, 0
      %p64 = por %p62, %p63
      %p65 = scmp.ne.s32.totalorder %s57, %s59
      %p66 = scmp.eq.s32.totalorder %s14, 1
      %p67 = por %p65, %p66
      %p68 = scmp.ne.s32.totalorder %s59, %s60
      %p69 = scmp.eq.s32.totalorder %s14, 0
      %p70 = por %p68, %p69
      %p71 = scmp.ne.s32.totalorder %s59, %s60
      %p72 = scmp.eq.s32.totalorder %s15, 1
      %p73 = por %p71, %p72
      %p75 = scmp.ne.s32.totalorder %s60, %s74
      %p76 = scmp.eq.s32.totalorder %s15, 0
      %p77 = por %p75, %p76
      %s78 = ssub.s32 %s16, %s28
      %s79 = ssub.s32 %s17, %s24
      %s80 = sor.u32 %s78, %s79
      %p81 = scmp.eq.s32.totalorder %s80, 0
      %s83 = sadd.s32 %s82, 1
      %s84 = scalar_select %p81, %s82, %s83
      %p87 = pneg %p81
      %p88 = scmp.eq.s32.totalorder %s9, 1
      %p89 = por %p87, %p88
      %p90 = scmp.ne.s32.totalorder %s82, %s85
      %p91 = scmp.eq.s32.totalorder %s9, 0
      %p92 = por %p90, %p91
      %p93 = scmp.ne.s32.totalorder %s82, %s85
      %p94 = scmp.eq.s32.totalorder %s14, 1
      %p95 = por %p93, %p94
      %p96 = scmp.ne.s32.totalorder %s85, %s86
      %p97 = scmp.eq.s32.totalorder %s14, 0
      %p98 = por %p96, %p97
      %p99 = scmp.ne.s32.totalorder %s85, %s86
      %p100 = scmp.eq.s32.totalorder %s15, 1
      %p101 = por %p99, %p100
      %p103 = scmp.ne.s32.totalorder %s86, %s102
      %p104 = scmp.eq.s32.totalorder %s15, 0
      %p105 = por %p103, %p104
      %p106 = scmp.le.s32.totalorder 1, %s9
      %p107 = scmp.lt.s32.totalorder %s9, 3
      %p108 = pnand %p106, %p107
      %p109 = pneg %p108
      // Predicated region
      $region9: #{tpu_custom_call.1} parent=5 // pred_check
        _
      $region10: #{tpu_custom_call.1} parent=5 // pred_check_branch
        %111 = sbr.rel (%p108) target = $region12
      $region11: #{tpu_custom_call.1} parent=5 // pred_region
        %s112 = ssub.s32 %s9, 1
        // Predicated region
        $region13: #{tpu_custom_call.1} parent=11 // pred_check
          %p113 = pneg %p70
        $region14: #{tpu_custom_call.1} parent=11 // pred_check_branch
          %115 = sbr.rel (%p113) target = $region16
        $region15: #{tpu_custom_call.1} parent=11 // pred_region
          %s117 = ssub.s32 16, 16
          %118 = vsyncadd [#allocation3], %s117
          %s120 = sshll.u32 %s1, 4
          %s121 = int_to_ptr.vmem [resolvable:$true] %s120
          %123 = dma.vmem_to_smem %s121, 16, [#allocation2], [#allocation3]
        $region16: #{tpu_custom_call.1} parent=11 // pred_fallthru
          _
      $region12: #{tpu_custom_call.1} parent=5 // pred_fallthru
        _
      %p124 = scmp.lt.s32.totalorder %s9, 2
      // Predicated region
      $region17: #{tpu_custom_call.1} parent=5 // pred_check
        %p125 = pneg %p124
      $region18: #{tpu_custom_call.1} parent=5 // pred_check_branch
        %127 = sbr.rel (%p125) target = $region20
      $region19: #{tpu_custom_call.1} parent=5 // pred_region
        // Predicated region
        $region21: #{tpu_custom_call.1} parent=19 // pred_check
          %p128 = pneg %p43
        $region22: #{tpu_custom_call.1} parent=19 // pred_check_branch
          %130 = sbr.rel (%p128) target = $region24
        $region23: #{tpu_custom_call.1} parent=19 // pred_region
          %s131 = smul.u32 2, %s17
          %p132 = scmp.lt.s32.totalorder %s16, 1
          %s133 = scalar_select %p132, %s16, 1
          %p134 = scmp.lt.s32.totalorder %s131, 1
          %s135 = scalar_select %p134, %s131, 1
          %s136 = smul.addr %s133, 8
          %s137 = sadd.s32 %s135, %s136
          %s138 = smul.addr %s137, 8
          %s139 = scalar_lea.vmem %s0, %s138
          %s140 = smul.u32 2, %s17
        $region24: #{tpu_custom_call.1} parent=19 // pred_fallthru
          _
      $region20: #{tpu_custom_call.1} parent=5 // pred_fallthru
        _
      %p141 = scmp.le.s32.totalorder 1, %s9
      %p142 = scmp.lt.s32.totalorder %s9, 3
      %p143 = pnand %p141, %p142
      %p144 = pneg %p143
      // Predicated region
      $region25: #{tpu_custom_call.1} parent=5 // pred_check
        _
      $region26: #{tpu_custom_call.1} parent=5 // pred_check_branch
        %146 = sbr.rel (%p143) target = $region28
      $region27: #{tpu_custom_call.1} parent=5 // pred_region
        %s147 = ssub.s32 %s9, 1
        // Predicated region
        $region29: #{tpu_custom_call.1} parent=27 // pred_check
          %p148 = pneg %p70
        $region30: #{tpu_custom_call.1} parent=27 // pred_check_branch
          %150 = sbr.rel (%p148) target = $region32
        $region31: #{tpu_custom_call.1} parent=27 // pred_region
          %151 = dma.done [#allocation3], 16
        $region32: #{tpu_custom_call.1} parent=27 // pred_fallthru
          _
        %152 = sfence
        %s153 = smul.u32 2, %s19
        %p154 = scmp.lt.s32.totalorder %s18, 1
        %s155 = scalar_select %p154, %s18, 1
        %p156 = scmp.lt.s32.totalorder %s153, 1
        %s157 = scalar_select %p156, %s153, 1
        %s158 = smul.addr %s155, 8
        %s159 = sadd.s32 %s157, %s158
        %s160 = smul.addr %s159, 8
        %s161 = scalar_lea.vmem %s0, %s160
        %p162 = pneg %p49
        %p163 = pneg %p46
        %p164 = pneg %p70
        %p165 = pneg %p67
        %p166 = pneg %p98
        %p167 = pneg %p95
        %s168 = smul.u32 2, %s19
        %p169 = scmp.lt.s32.totalorder %s18, 1
        %s170 = scalar_select %p169, %s18, 1
        %p171 = scmp.lt.s32.totalorder %s168, 1
        %s172 = scalar_select %p171, %s168, 1
        %s173 = smul.addr %s170, 2
        %s174 = sadd.s32 %s172, %s173
        %s175 = smul.addr %s174, 8
        %s176 = scalar_lea.vmem %s2, %s175
        %s177 = smul.u32 2, %s19
        %p178 = scmp.lt.s32.totalorder %s18, 1
        %s179 = scalar_select %p178, %s18, 1
        %p180 = scmp.lt.s32.totalorder %s177, 1
        %s181 = scalar_select %p180, %s177, 1
        %s182 = smul.addr %s179, 8
        %s183 = sadd.s32 %s181, %s182
        %s184 = smul.addr %s183, 8
        %s185 = scalar_lea.vmem %s0, %s184
        %s186 = smul.u32 2, %s19
        %s187 = smul.u32 2, %s19
        %p188 = scmp.lt.s32.totalorder %s18, 1
        %s189 = scalar_select %p188, %s18, 1
        %p190 = scmp.lt.s32.totalorder %s187, 1
        %s191 = scalar_select %p190, %s187, 1
        %s192 = smul.addr %s189, 2
        %s193 = sadd.s32 %s191, %s192
        %s194 = smul.addr %s193, 8
        %s195 = scalar_lea.vmem %s2, %s194
        %s196 = smul.u32 2, %s19
        %v197 = vld [vmem:[%s185] sm:$0xff]
        %v198 = vld [vmem:[%s185 + $0x8] sm:$0xff]
        %v199 = vld [vmem:[%s185 + $0x10] sm:$0xff]
        %v200 = vld [vmem:[%s185 + $0x18] sm:$0xff]
        %v201 = vld [vmem:[%s185 + $0x20] sm:$0xff]
        %v202 = vld [vmem:[%s185 + $0x28] sm:$0xff]
        %v203 = vld [vmem:[%s185 + $0x30] sm:$0xff]
        %v204 = vld [vmem:[%s185 + $0x38] sm:$0xff]
        %s205 = sld [smem:[#allocation2]]
        %s206 = sld [smem:[#allocation2 + $0x1]]
        %s207 = sld [smem:[#allocation2 + $0x2]]
        %s208 = sld [smem:[#allocation2 + $0x3]]
        %vm209 = vcmask 31744
        %v210 = vsel %vm209, %v197, -inf
        %v211 = vsel %vm209, %v199, -inf
        %v212 = vsel %vm209, %v201, -inf
        %v213 = vmax.f32 %v210, %v212
        %v214 = vsel %vm209, %v203, -inf
        %v215 = vmax.f32 %v211, %v214
        %v216 = vmax.f32 %v213, %v215
        %v217 = vsel %vm209, %v198, -inf
        %v218 = vsel %vm209, %v200, -inf
        %v219 = vsel %vm209, %v202, -inf
        %v220 = vmax.f32 %v217, %v219
        %v221 = vsel %vm209, %v204, -inf
        %v222 = vmax.f32 %v218, %v221
        %v223 = vmax.f32 %v220, %v222
        %v224 = vsel %vm209, %v197, 0.0
        %v225 = vsel %vm209, %v199, 0.0
        %v226 = vadd.f32 %v224, %v225
        %v227 = vsel %vm209, %v201, 0.0
        %v228 = vadd.f32 %v226, %v227
        %v229 = vsel %vm209, %v203, 0.0
        %v230 = vadd.f32 %v228, %v229
        %v231 = vsel %vm209, %v198, 0.0
        %v232 = vsel %vm209, %v200, 0.0
        %v233 = vadd.f32 %v231, %v232
        %v234 = vsel %vm209, %v202, 0.0
        %v235 = vadd.f32 %v233, %v234
        %v236 = vsel %vm209, %v204, 0.0
        %v237 = vadd.f32 %v235, %v236
        %v238 = vstv %s208
        %v239 = vmul.f32 %v230, %v238
        %v240 = vmul.f32 %v237, %v238
        %v241 = vstv %s205
        %v242 = vmul.f32 %v241, %v216
        %v243 = vmul.f32 %v241, %v223
        %v244 = vstv %s206
        %v245 = vmul.f32 %v244, %v239
        %v246 = vmul.f32 %v244, %v240
        %v247 = vadd.f32 %v242, %v245
        %v248 = vadd.f32 %v243, %v246
        %v249 = vstv %s207
        %v250 = vadd.f32 %v247, %v249
        %v251 = vadd.f32 %v248, %v249
        %v252 = vmax.f32 %v250, 0.0
        %v253 = vmax.f32 %v251, 0.0
        %v254 = vxor.u32 %v252, 2147483648
        %v255 = vxor.u32 %v253, 2147483648
        %v256 = vmul.f32 %v254, 1.442695
        %v257 = vpow.pop %v256
        %v258 = vmul.f32 %v255, 1.442695
        %v259 = vpow.pop %v258
        %v260 = vadd.f32 %v257, 1.0
        %v261 = vadd.f32 %v259, 1.0
        %v262 = vrcp.pop %v260
        %v263 = vmul.f32 1.0, %v262
        %v264 = vrcp.pop %v261
        %v265 = vmul.f32 1.0, %v264
        %266 = vst.msk [vmem:[%s195] sm:$0xff] %vm209, %v263
        %267 = vst.msk [vmem:[%s195 + $0x8] sm:$0xff] %vm209, %v265
        %s268 = smul.u32 2, %s19
        %p269 = scmp.lt.s32.totalorder %s18, 1
        %s270 = scalar_select %p269, %s18, 1
        %p271 = scmp.lt.s32.totalorder %s268, 1
        %s272 = scalar_select %p271, %s268, 1
        %s273 = smul.addr %s270, 2
        %s274 = sadd.s32 %s272, %s273
        %s275 = smul.addr %s274, 8
        %s276 = scalar_lea.vmem %s2, %s275
        // Predicated region
        $region33: #{tpu_custom_call.1} parent=27 // pred_check
          %p277 = pneg %p95
        $region34: #{tpu_custom_call.1} parent=27 // pred_check_branch
          %279 = sbr.rel (%p277) target = $region36
        $region35: #{tpu_custom_call.1} parent=27 // pred_region
          %s280 = smul.u32 2, %s19
        $region36: #{tpu_custom_call.1} parent=27 // pred_fallthru
          _
      $region28: #{tpu_custom_call.1} parent=5 // pred_fallthru
        _
      %p281 = scmp.le.s32.totalorder 2, %s9
      // Predicated region
      $region37: #{tpu_custom_call.1} parent=5 // pred_check
        %p282 = pneg %p281
      $region38: #{tpu_custom_call.1} parent=5 // pred_check_branch
        %284 = sbr.rel (%p282) target = $region40
      $region39: #{tpu_custom_call.1} parent=5 // pred_region
        %s285 = ssub.s32 %s9, 2
        // Predicated region
        $region41: #{tpu_custom_call.1} parent=39 // pred_check
          %p286 = pneg %p101
        $region42: #{tpu_custom_call.1} parent=39 // pred_check_branch
          %288 = sbr.rel (%p286) target = $region44
        $region43: #{tpu_custom_call.1} parent=39 // pred_region
          %s289 = smul.u32 2, %s21
          %p290 = scmp.lt.s32.totalorder %s20, 1
          %s291 = scalar_select %p290, %s20, 1
          %p292 = scmp.lt.s32.totalorder %s289, 1
          %s293 = scalar_select %p292, %s289, 1
          %s294 = smul.addr %s291, 2
          %s295 = sadd.s32 %s293, %s294
          %s296 = smul.addr %s295, 8
          %s297 = scalar_lea.vmem %s2, %s296
        $region44: #{tpu_custom_call.1} parent=39 // pred_fallthru
          _
      $region40: #{tpu_custom_call.1} parent=5 // pred_fallthru
        _
    $region6: #{tpu_custom_call.1} parent=1 // loop_footer
      %s13 = sadd.s32 1, %s9
    $region7: #{tpu_custom_call.1} parent=1 // loop_footer_branch
      %8 = sbr.rel target = $region3
    $region8: #{tpu_custom_call.1} parent=1 // loop_exit
      _
    %298 = vsyncpa [#allocation3], 1
    %s299 = scalar_lea.sflag [#allocation3], 1
    %300 = vsyncpa %s299, 1

</llo_original>
